<compile_context>
chip_gen: v5e
topology: v5e:2x2
jax: 0.10.0
libtpu: 0.0.40
codegen_flags: <defaults>
</compile_context>

<pallas_src>
import jax
import jax.numpy as jnp
from jax.experimental import pallas as pl
from jax.experimental.pallas import tpu as pltpu


def _rope_kernel(x_ref, cos_ref, sin_ref, o_ref):
    x = x_ref[...]        # (tS, D)
    cos = cos_ref[...]    # (tS, D)  per-pair cos repeated twice along lanes
    sin = sin_ref[...]    # (tS, D)  per-pair sin with interleaved (-,+) signs
    d = x.shape[-1]
    # Even/odd lane mask from a tiny (1, D) iota (broadcast against the tile).
    lane = jax.lax.broadcasted_iota(jnp.int32, (1, d), 1)
    even = (lane & 1) == 0
    # Circular rolls along the lane axis (XLU slot, overlaps the VALU work).
    # NOTE: pltpu.roll needs a non-negative axis -> axis=1 for the 2-D tile.
    x_next = pltpu.roll(x, shift=d - 1, axis=1)   # result[i] = x[(i+1) % d]
    x_prev = pltpu.roll(x, shift=1, axis=1)       # result[i] = x[(i-1) % d]
    # rot[2i] = x[2i+1],  rot[2i+1] = x[2i]  (pair swap; no wrap leakage since
    # the wrapped lanes fall on the branch of the select that ignores them).
    rot = jnp.where(even, x_next, x_prev)
    # out[2i]   = x1*cos - x2*sin   (sign baked into sin_signed)
    # out[2i+1] = x2*cos + x1*sin
    o_ref[...] = x * cos + rot * sin


def make_rope_tables(dim, max_seq_len=2048, dtype=jnp.float32):
    """Pre-expanded cos / signed-sin caches (match the PyTorch __init__ math)."""
    assert dim % 2 == 0
    freqs = 1.0 / (10000.0 ** (jnp.arange(0, dim, 2, dtype=jnp.float32) / dim))
    positions = jnp.arange(max_seq_len, dtype=jnp.float32)
    ang = jnp.outer(positions, freqs)                      # (max_seq_len, dim//2)
    cos = jnp.cos(ang)
    sin = jnp.sin(ang)
    cos_full = jnp.repeat(cos, 2, axis=-1)                 # c0,c0,c1,c1,...
    sin_signed = jnp.stack([-sin, sin], axis=-1).reshape(max_seq_len, dim)
    return cos_full.astype(dtype), sin_signed.astype(dtype)


def _pick_seq_tile(S, max_tile=512):
    """Largest multiple-of-8 divisor of S that is <= max_tile (else full S)."""
    if S <= max_tile:
        return S
    t = (max_tile // 8) * 8
    while t >= 8:
        if S % t == 0:
            return t
        t -= 8
    return S


def rope_pallas(x, cos_full, sin_signed, seq_len=None, max_seq_tile=512):
    B, S, D = x.shape
    if seq_len is not None and seq_len != S:
        raise ValueError("seq_len must match x.shape[1] (as in the PyTorch forward)")
    assert D % 2 == 0
    assert cos_full.shape[0] >= S and cos_full.shape[1] == D
    # Only a slice per call; tables already expanded / signed / in target dtype.
    cos_s = jax.lax.slice_in_dim(cos_full, 0, S, axis=0).astype(x.dtype)
    sin_s = jax.lax.slice_in_dim(sin_signed, 0, S, axis=0).astype(x.dtype)

    tS = _pick_seq_tile(S, max_seq_tile)
    grid = (B, S // tS)
    # TODO(synk): if used per-head with head_dim < 128, fold heads into the last
    # dim before calling so stores stay lane-dense (pair-swap makes this safe).
    return pl.pallas_call(
        _rope_kernel,
        out_shape=jax.ShapeDtypeStruct((B, S, D), x.dtype),
        grid=grid,
        in_specs=[
            pl.BlockSpec((None, tS, D), lambda b, j: (b, j, 0)),  # x slab
            pl.BlockSpec((tS, D), lambda b, j: (j, 0)),           # cos tile
            pl.BlockSpec((tS, D), lambda b, j: (j, 0)),           # signed-sin tile
        ],
        out_specs=pl.BlockSpec((None, tS, D), lambda b, j: (b, j, 0)),
        compiler_params=pltpu.CompilerParams(
            dimension_semantics=("parallel", "parallel")),
    )(x, cos_s, sin_s)


def rope_reference(x, max_seq_len=2048):
    """Straight JAX port of the PyTorch forward for validation."""
    B, S, D = x.shape
    freqs = 1.0 / (10000.0 ** (jnp.arange(0, D, 2, dtype=jnp.float32) / D))
    positions = jnp.arange(max_seq_len, dtype=jnp.float32)
    ang = jnp.outer(positions, freqs)
    cos = jnp.cos(ang)[:S][None]                   # (1, S, D//2)
    sin = jnp.sin(ang)[:S][None]
    xr = x.reshape(*x.shape[:-1], -1, 2)
    x1, x2 = xr[..., 0], xr[..., 1]
    rx1 = x1 * cos - x2 * sin
    rx2 = x1 * sin + x2 * cos
    return jnp.stack([rx1, rx2], axis=-1).reshape(x.shape).astype(x.dtype)


if __name__ == "__main__":
    B, S, D = 2, 16, 128                           # small, lane-aligned shapes
    MAX_SEQ = 64
    key = jax.random.PRNGKey(0)
    x = jax.random.normal(key, (B, S, D), dtype=jnp.float32)

    cos_full, sin_signed = make_rope_tables(D, max_seq_len=MAX_SEQ,
                                            dtype=x.dtype)

    out = rope_pallas(x, cos_full, sin_signed)
    out = jax.block_until_ready(out)

    ref = rope_reference(x, max_seq_len=MAX_SEQ)
    assert out.shape == x.shape and out.dtype == x.dtype
    assert jnp.allclose(out, ref, atol=1e-5, rtol=1e-5), float(
        jnp.max(jnp.abs(out - ref))
    )
    print("KERNEL_OK")
</pallas_src>

<mosaic_0001>
module attributes {stable_mosaic.version = 11 : i64} {
  func.func @_rope_kernel(%arg0: i32, %arg1: i32, %arg2: memref<1x16x128xf32, #tpu.memory_space<vmem>>, %arg3: memref<16x128xf32, #tpu.memory_space<vmem>>, %arg4: memref<16x128xf32, #tpu.memory_space<vmem>>, %arg5: memref<1x16x128xf32, #tpu.memory_space<vmem>>) attributes {dimension_semantics = [#tpu.dimension_semantics<parallel>, #tpu.dimension_semantics<parallel>], iteration_bounds = array<i64: 2, 1>, scalar_prefetch = 0 : i64, scratch_operands = 0 : i64, tpu.core_type = #tpu.core_type<tc>, window_params = [{transform_indices = @transform_0, window_bounds = array<i64: 1, 16, 128>}, {transform_indices = @transform_1, window_bounds = array<i64: 16, 128>}, {transform_indices = @transform_2, window_bounds = array<i64: 16, 128>}, {transform_indices = @transform_3, window_bounds = array<i64: 1, 16, 128>}]} {
    %c0 = arith.constant 0 : index
    %c0_0 = arith.constant 0 : index
    %c0_1 = arith.constant 0 : index
    %0 = vector.load %arg2[%c0, %c0_0, %c0_1] : memref<1x16x128xf32, #tpu.memory_space<vmem>>, vector<1x16x128xf32>
    %1 = vector.shape_cast %0 : vector<1x16x128xf32> to vector<16x128xf32>
    %c0_2 = arith.constant 0 : index
    %c0_3 = arith.constant 0 : index
    %2 = vector.load %arg3[%c0_2, %c0_3] : memref<16x128xf32, #tpu.memory_space<vmem>>, vector<16x128xf32>
    %c0_4 = arith.constant 0 : index
    %c0_5 = arith.constant 0 : index
    %3 = vector.load %arg4[%c0_4, %c0_5] : memref<16x128xf32, #tpu.memory_space<vmem>>, vector<16x128xf32>
    %4 = tpu.iota {dimensions = array<i32: 1>} : vector<1x128xi32>
    %c1_i32 = arith.constant 1 : i32
    %5 = vector.broadcast %c1_i32 : i32 to vector<1x128xi32>
    %6 = arith.andi %4, %5 : vector<1x128xi32>
    %c0_i32 = arith.constant 0 : i32
    %7 = vector.broadcast %c0_i32 : i32 to vector<1x128xi32>
    %8 = arith.cmpi eq, %6, %7 : vector<1x128xi32>
    %c127_i32 = arith.constant 127 : i32
    %9 = tpu.dynamic_rotate %1 by %c127_i32 dim 1 : vector<16x128xf32>, i32 -> vector<16x128xf32>
    %c1_i32_6 = arith.constant 1 : i32
    %10 = tpu.dynamic_rotate %1 by %c1_i32_6 dim 1 : vector<16x128xf32>, i32 -> vector<16x128xf32>
    %11 = vector.shape_cast %8 : vector<1x128xi1> to vector<1x128xi1>
    %12 = vector.broadcast %11 : vector<1x128xi1> to vector<16x128xi1>
    %13 = arith.select %12, %9, %10 : vector<16x128xi1>, vector<16x128xf32>
    %14 = arith.mulf %1, %2 : vector<16x128xf32>
    %15 = arith.mulf %13, %3 : vector<16x128xf32>
    %16 = arith.addf %14, %15 : vector<16x128xf32>
    %c0_7 = arith.constant 0 : index
    %c0_8 = arith.constant 0 : index
    %c0_9 = arith.constant 0 : index
    %17 = vector.load %arg5[%c0_7, %c0_8, %c0_9] : memref<1x16x128xf32, #tpu.memory_space<vmem>>, vector<1x16x128xf32>
    %18 = vector.shape_cast %17 : vector<1x16x128xf32> to vector<16x128xf32>
    %19 = vector.shape_cast %16 : vector<16x128xf32> to vector<1x16x128xf32>
    tpu.vector_store %arg5[%c0_7, %c0_8, %c0_9], %19 {strides = array<i32>} : memref<1x16x128xf32, #tpu.memory_space<vmem>>, vector<1x16x128xf32>,
    return
  }
  func.func @transform_0(%arg0: i32, %arg1: i32) -> (i32, i32, i32) {
    %c0_i32 = arith.constant 0 : i32
    %c0_i32_0 = arith.constant 0 : i32
    return %arg0, %arg1, %c0_i32 : i32, i32, i32
  }
  func.func @transform_1(%arg0: i32, %arg1: i32) -> (i32, i32) {
    %c0_i32 = arith.constant 0 : i32
    %c0_i32_0 = arith.constant 0 : i32
    return %arg1, %c0_i32 : i32, i32
  }
  func.func @transform_2(%arg0: i32, %arg1: i32) -> (i32, i32) {
    %c0_i32 = arith.constant 0 : i32
    %c0_i32_0 = arith.constant 0 : i32
    return %arg1, %c0_i32 : i32, i32
  }
  func.func @transform_3(%arg0: i32, %arg1: i32) -> (i32, i32, i32) {
    %c0_i32 = arith.constant 0 : i32
    %c0_i32_0 = arith.constant 0 : i32
    return %arg0, %arg1, %c0_i32 : i32, i32, i32
  }
}

</mosaic_0001>

<llo_original>
// kernel: tpu_custom_call.1
$region0: #{tpu_custom_call.1}
  #allocation0 [shape = 'u32[]', space=smem, size = 0x4, offset = 0x4, fixed_abs, tag = 'smem constant byte address 0x4 - core index']
  #allocation1 [shape = 'u32[72,128]{1,0:T(1,128)}', space=vmem, size = 0x9000, scoped, tag = 'internal scratch']
  %s0 = inlined_call_operand.hbm [shape: f32[2,16,128], index: 0, kind: input, shape index: {}]
  %s1 = inlined_call_operand.hbm [shape: f32[16,128], index: 1, kind: input, shape index: {}]
  %s2 = inlined_call_operand.hbm [shape: f32[16,128], index: 2, kind: input, shape index: {}]
  %s3 = inlined_call_operand.hbm [shape: f32[2,16,128], index: 3, kind: output, shape index: {}]
  %s4 = sld [smem:[#allocation0]]
  $region57: #{tpu_custom_call.1} parent=0
    _
  %s6 = ssub.s32 1, %s4
  %s7 = scalar_select 0, %s6, %s4
  $region1: #{tpu_custom_call.1} parent=0
    #allocation2 [shape = 'u8[16384]{0}', space=vmem, size = 0x4000, scoped, tag = 'input window, operand 0']
    #allocation3 [shape = 's32[2]{0}', space=sflag, size = 0x8, scoped, tag = 'scoped memory for tpu_custom_call.1']
    #allocation4 [shape = 's32[2]{0}', space=sflag, size = 0x8, scoped, tag = 'scoped memory for tpu_custom_call.1']
    #allocation5 [shape = 'u8[8192]{0}', space=vmem, size = 0x2000, scoped, tag = 'input window, operand 1, single buffered']
    #allocation6 [shape = 's32[1]{0}', space=sflag, size = 0x4, scoped, tag = 'scoped memory for tpu_custom_call.1']
    #allocation7 [shape = 'u8[8192]{0}', space=vmem, size = 0x2000, scoped, tag = 'input window, operand 2, single buffered']
    #allocation8 [shape = 'u8[16384]{0}', space=vmem, size = 0x4000, scoped, tag = 'output window, operand 0']
    %8 = vsyncpa [#allocation3], 0
    %s9 = scalar_lea.sflag [#allocation3], 1
    %10 = vsyncpa %s9, 0
    %11 = vsyncpa [#allocation6], 0
    %12 = vsyncpa [#allocation4], 0
    %s13 = scalar_lea.sflag [#allocation4], 1
    %14 = vsyncpa %s13, 0
    loop: start=0, step=1, limit=4
    $region2: #{tpu_custom_call.1} parent=1 // loop_pre_header
      _
    $region3: #{tpu_custom_call.1} parent=1 // loop_header
      %s16 = sphi 0, %s20
      %p17 = scmp.ge.s32.totalorder %s16, 4
      %s23 = sphi 0, %s35
      %s24 = sphi 0, %s31
      %s25 = sphi 0, %s23
      %s26 = sphi 0, %s24
      %s27 = sphi 0, %s25
      %s28 = sphi 0, %s26
      %s40 = sphi 0, %s42
      %s43 = sphi 0, %s40
      %s44 = sphi 0, %s43
      %s60 = sphi 0, %s44
      %s66 = sphi 0, %s68
      %s69 = sphi 0, %s66
      %s70 = sphi 0, %s69
      %s86 = sphi 0, %s70
      %s92 = sphi 0, %s94
      %s95 = sphi 0, %s92
      %s96 = sphi 0, %s95
      %s112 = sphi 0, %s96
      %s120 = sphi 0, %s122
      %s123 = sphi 0, %s120
      %s124 = sphi 0, %s123
      %s140 = sphi 0, %s124
    $region4: #{tpu_custom_call.1} parent=1 // loop_header_branch
      %19 = sbr.rel (%p17) target = $region8
    $region5: #{tpu_custom_call.1} parent=1 // loop_body
      %s21 = ssub.s32 %s16, 1
      %s22 = ssub.s32 %s16, 2
      %s29 = sadd.s32 1, %s24
      %p30 = scmp.ge.s32.totalorder %s29, 1
      %s31 = scalar_select %p30, 0, %s29
      %s32 = sadd.s32 1, %s23
      %s33 = scalar_select %p30, %s32, %s23
      %p34 = scmp.ge.s32.totalorder %s33, 2
      %s35 = scalar_select %p34, 0, %s33
      %s36 = ssub.s32 %s23, %s35
      %s37 = ssub.s32 %s24, %s31
      %s38 = sor.u32 %s36, %s37
      %p39 = scmp.eq.s32.totalorder %s38, 0
      %s41 = sadd.s32 %s40, 1
      %s42 = scalar_select %p39, %s40, %s41
      %p45 = pneg %p39
      %p46 = scmp.eq.s32.totalorder %s16, 1
      %p47 = por %p45, %p46
      %p48 = scmp.ne.s32.totalorder %s40, %s43
      %p49 = scmp.eq.s32.totalorder %s16, 0
      %p50 = por %p48, %p49
      %p51 = scmp.ne.s32.totalorder %s40, %s43
      %p52 = scmp.eq.s32.totalorder %s21, 1
      %p53 = por %p51, %p52
      %p54 = scmp.ne.s32.totalorder %s43, %s44
      %p55 = scmp.eq.s32.totalorder %s21, 0
      %p56 = por %p54, %p55
      %p57 = scmp.ne.s32.totalorder %s43, %s44
      %p58 = scmp.eq.s32.totalorder %s22, 1
      %p59 = por %p57, %p58
      %p61 = scmp.ne.s32.totalorder %s44, %s60
      %p62 = scmp.eq.s32.totalorder %s22, 0
      %p63 = por %p61, %p62
      %s64 = ssub.s32 %s24, %s31
      %p65 = scmp.eq.s32.totalorder %s64, 0
      %s67 = sadd.s32 %s66, 1
      %s68 = scalar_select %p65, %s66, %s67
      %p71 = pneg %p65
      %p72 = scmp.eq.s32.totalorder %s16, 1
      %p73 = por %p71, %p72
      %p74 = scmp.ne.s32.totalorder %s66, %s69
      %p75 = scmp.eq.s32.totalorder %s16, 0
      %p76 = por %p74, %p75
      %p77 = scmp.ne.s32.totalorder %s66, %s69
      %p78 = scmp.eq.s32.totalorder %s21, 1
      %p79 = por %p77, %p78
      %p80 = scmp.ne.s32.totalorder %s69, %s70
      %p81 = scmp.eq.s32.totalorder %s21, 0
      %p82 = por %p80, %p81
      %p83 = scmp.ne.s32.totalorder %s69, %s70
      %p84 = scmp.eq.s32.totalorder %s22, 1
      %p85 = por %p83, %p84
      %p87 = scmp.ne.s32.totalorder %s70, %s86
      %p88 = scmp.eq.s32.totalorder %s22, 0
      %p89 = por %p87, %p88
      %s90 = ssub.s32 %s24, %s31
      %p91 = scmp.eq.s32.totalorder %s90, 0
      %s93 = sadd.s32 %s92, 1
      %s94 = scalar_select %p91, %s92, %s93
      %p97 = pneg %p91
      %p98 = scmp.eq.s32.totalorder %s16, 1
      %p99 = por %p97, %p98
      %p100 = scmp.ne.s32.totalorder %s92, %s95
      %p101 = scmp.eq.s32.totalorder %s16, 0
      %p102 = por %p100, %p101
      %p103 = scmp.ne.s32.totalorder %s92, %s95
      %p104 = scmp.eq.s32.totalorder %s21, 1
      %p105 = por %p103, %p104
      %p106 = scmp.ne.s32.totalorder %s95, %s96
      %p107 = scmp.eq.s32.totalorder %s21, 0
      %p108 = por %p106, %p107
      %p109 = scmp.ne.s32.totalorder %s95, %s96
      %p110 = scmp.eq.s32.totalorder %s22, 1
      %p111 = por %p109, %p110
      %p113 = scmp.ne.s32.totalorder %s96, %s112
      %p114 = scmp.eq.s32.totalorder %s22, 0
      %p115 = por %p113, %p114
      %s116 = ssub.s32 %s23, %s35
      %s117 = ssub.s32 %s24, %s31
      %s118 = sor.u32 %s116, %s117
      %p119 = scmp.eq.s32.totalorder %s118, 0
      %s121 = sadd.s32 %s120, 1
      %s122 = scalar_select %p119, %s120, %s121
      %p125 = pneg %p119
      %p126 = scmp.eq.s32.totalorder %s16, 1
      %p127 = por %p125, %p126
      %p128 = scmp.ne.s32.totalorder %s120, %s123
      %p129 = scmp.eq.s32.totalorder %s16, 0
      %p130 = por %p128, %p129
      %p131 = scmp.ne.s32.totalorder %s120, %s123
      %p132 = scmp.eq.s32.totalorder %s21, 1
      %p133 = por %p131, %p132
      %p134 = scmp.ne.s32.totalorder %s123, %s124
      %p135 = scmp.eq.s32.totalorder %s21, 0
      %p136 = por %p134, %p135
      %p137 = scmp.ne.s32.totalorder %s123, %s124
      %p138 = scmp.eq.s32.totalorder %s22, 1
      %p139 = por %p137, %p138
      %p141 = scmp.ne.s32.totalorder %s124, %s140
      %p142 = scmp.eq.s32.totalorder %s22, 0
      %p143 = por %p141, %p142
      %p144 = scmp.le.s32.totalorder 1, %s16
      %p145 = scmp.lt.s32.totalorder %s16, 3
      %p146 = pnand %p144, %p145
      %p147 = pneg %p146
      // Predicated region
      $region9: #{tpu_custom_call.1} parent=5 // pred_check
        _
      $region10: #{tpu_custom_call.1} parent=5 // pred_check_branch
        %149 = sbr.rel (%p146) target = $region12
      $region11: #{tpu_custom_call.1} parent=5 // pred_region
        %s150 = ssub.s32 %s16, 1
        // Predicated region
        $region13: #{tpu_custom_call.1} parent=11 // pred_check
          %p151 = pneg %p82
        $region14: #{tpu_custom_call.1} parent=11 // pred_check_branch
          %153 = sbr.rel (%p151) target = $region16
        $region15: #{tpu_custom_call.1} parent=11 // pred_region
          %s154 = smul.u32 2, %s26
          %156 = vsyncadd [#allocation6], 0
          %s157 = smul.addr %s154, 8
          %s158 = scalar_lea.hbm %s1, %s157
          %s159 = sshll.u32 %s158, 4
          %s160 = int_to_ptr.hbm [resolvable:$true] %s159
          %s161 = sshll.u32 [#allocation5], 4
          %s162 = int_to_ptr.vmem [resolvable:$true] %s161
          %167 = dma.hbm_to_vmem [thread:$0]  %s160, 256, %s162, [#allocation6], 128, 128, 8
        $region16: #{tpu_custom_call.1} parent=11 // pred_fallthru
          _
        // Predicated region
        $region17: #{tpu_custom_call.1} parent=11 // pred_check
          %p168 = pneg %p108
        $region18: #{tpu_custom_call.1} parent=11 // pred_check_branch
          %170 = sbr.rel (%p168) target = $region20
        $region19: #{tpu_custom_call.1} parent=11 // pred_region
          %s171 = smul.u32 2, %s26
          %173 = vsyncadd [#allocation6], 0
          %s174 = smul.addr %s171, 8
          %s175 = scalar_lea.hbm %s2, %s174
          %s176 = sshll.u32 %s175, 4
          %s177 = int_to_ptr.hbm [resolvable:$true] %s176
          %s178 = sshll.u32 [#allocation7], 4
          %s179 = int_to_ptr.vmem [resolvable:$true] %s178
          %184 = dma.hbm_to_vmem [thread:$0]  %s177, 256, %s179, [#allocation6], 128, 128, 8
        $region20: #{tpu_custom_call.1} parent=11 // pred_fallthru
          _
      $region12: #{tpu_custom_call.1} parent=5 // pred_fallthru
        _
      %p185 = scmp.lt.s32.totalorder %s16, 2
      // Predicated region
      $region21: #{tpu_custom_call.1} parent=5 // pred_check
        %p186 = pneg %p185
      $region22: #{tpu_custom_call.1} parent=5 // pred_check_branch
        %188 = sbr.rel (%p186) target = $region24
      $region23: #{tpu_custom_call.1} parent=5 // pred_region
        // Predicated region
        $region25: #{tpu_custom_call.1} parent=23 // pred_check
          %p189 = pneg %p50
        $region26: #{tpu_custom_call.1} parent=23 // pred_check_branch
          %191 = sbr.rel (%p189) target = $region28
        $region27: #{tpu_custom_call.1} parent=23 // pred_region
          %s192 = sand.u32 %s40, 1
          %s193 = scalar_lea.sflag [#allocation3], %s192
          %s194 = sand.u32 %s40, 1
          %s195 = smul.addr %s194, 16
          %s196 = scalar_lea.vmem [#allocation2], %s195
          %s197 = smul.u32 2, %s24
          %199 = vsyncadd %s193, 0
          %s200 = smul.addr %s23, 2
          %s201 = sadd.s32 %s197, %s200
          %s202 = smul.addr %s201, 8
          %s203 = scalar_lea.hbm %s0, %s202
          %s204 = sshll.u32 %s203, 4
          %s205 = int_to_ptr.hbm [resolvable:$true] %s204
          %s206 = sshll.u32 %s196, 4
          %s207 = int_to_ptr.vmem [resolvable:$true] %s206
          %212 = dma.hbm_to_vmem [thread:$0]  %s205, 256, %s207, %s193, 128, 128, 8
        $region28: #{tpu_custom_call.1} parent=23 // pred_fallthru
          _
      $region24: #{tpu_custom_call.1} parent=5 // pred_fallthru
        _
      %p213 = scmp.le.s32.totalorder 1, %s16
      %p214 = scmp.lt.s32.totalorder %s16, 3
      %p215 = pnand %p213, %p214
      %p216 = pneg %p215
      // Predicated region
      $region29: #{tpu_custom_call.1} parent=5 // pred_check
        _
      $region30: #{tpu_custom_call.1} parent=5 // pred_check_branch
        %218 = sbr.rel (%p215) target = $region32
      $region31: #{tpu_custom_call.1} parent=5 // pred_region
        %s219 = ssub.s32 %s16, 1
        %s220 = sand.u32 %s43, 1
        %s221 = scalar_lea.sflag [#allocation3], %s220
        %s222 = sand.u32 %s43, 1
        %s223 = smul.addr %s222, 16
        %s224 = scalar_lea.vmem [#allocation2], %s223
        // Predicated region
        $region33: #{tpu_custom_call.1} parent=31 // pred_check
          %p225 = pneg %p56
        $region34: #{tpu_custom_call.1} parent=31 // pred_check_branch
          %227 = sbr.rel (%p225) target = $region36
        $region35: #{tpu_custom_call.1} parent=31 // pred_region
          %229 = dma.done %s221, 256
        $region36: #{tpu_custom_call.1} parent=31 // pred_fallthru
          _
        // Predicated region
        $region37: #{tpu_custom_call.1} parent=31 // pred_check
          %p230 = pneg %p82
        $region38: #{tpu_custom_call.1} parent=31 // pred_check_branch
          %232 = sbr.rel (%p230) target = $region40
        $region39: #{tpu_custom_call.1} parent=31 // pred_region
          %234 = dma.done [#allocation6], 256
        $region40: #{tpu_custom_call.1} parent=31 // pred_fallthru
          _
        // Predicated region
        $region41: #{tpu_custom_call.1} parent=31 // pred_check
          %p235 = pneg %p108
        $region42: #{tpu_custom_call.1} parent=31 // pred_check_branch
          %237 = sbr.rel (%p235) target = $region44
        $region43: #{tpu_custom_call.1} parent=31 // pred_region
          %239 = dma.done [#allocation6], 256
        $region44: #{tpu_custom_call.1} parent=31 // pred_fallthru
          _
        %s240 = sand.u32 %s43, 1
        %s241 = scalar_lea.sflag [#allocation3], %s240
        %s242 = sand.u32 %s43, 1
        %s243 = smul.addr %s242, 16
        %s244 = scalar_lea.vmem [#allocation2], %s243
        %p245 = pneg %p56
        %p246 = pneg %p53
        %p247 = pneg %p82
        %p248 = pneg %p79
        %p249 = pneg %p108
        %p250 = pneg %p105
        %p251 = pneg %p136
        %p252 = pneg %p133
        %s253 = sand.u32 %s123, 1
        %s254 = scalar_lea.sflag [#allocation4], %s253
        %s255 = sand.u32 %s123, 1
        %s256 = smul.addr %s255, 16
        %s257 = scalar_lea.vmem [#allocation8], %s256
        %s258 = smul.u32 2, %s26
        %s259 = smul.u32 2, %s26
        %s260 = smul.u32 2, %s26
        %s261 = smul.u32 2, %s26
        %v262 = vld [vmem:[%s224] sm:$0xff]
        %v263 = vld [vmem:[%s224 + $0x8] sm:$0xff]
        %v264 = vld [vmem:[#allocation5] sm:$0xff]
        %v265 = vld [vmem:[#allocation5 + $0x8] sm:$0xff]
        %v266 = vld [vmem:[#allocation7] sm:$0xff]
        %v267 = vld [vmem:[#allocation7 + $0x8] sm:$0xff]
        %v268 = vlaneseq
        %v269 = vand.u32 %v268, 127
        %v270 = vand.u32 %v269, 1
        %vm271 = vcmp.eq.s32.totalorder %v270, 0
        %272 = vrot.lane.b32.xlu0 %v262, 127
        %v273 = vpop.permute.xlu0 %272
        %274 = vrot.lane.b32.xlu0 %v263, 127
        %v275 = vpop.permute.xlu0 %274
        %276 = vrot.lane.b32.xlu0 %v262, 1
        %v277 = vpop.permute.xlu0 %276
        %278 = vrot.lane.b32.xlu0 %v263, 1
        %v279 = vpop.permute.xlu0 %278
        %v280 = vsel %vm271, 1, 0
        %vm281 = vcmp.eq.s32.totalorder %v280, 1
        %v282 = vsel %vm281, %v273, %v277
        %v283 = vsel %vm281, %v275, %v279
        %v284 = vmul.f32 %v262, %v264
        %v285 = vmul.f32 %v263, %v265
        %v286 = vmul.f32 %v282, %v266
        %v287 = vmul.f32 %v283, %v267
        %v288 = vadd.f32 %v284, %v286
        %v289 = vadd.f32 %v285, %v287
        %290 = vst [vmem:[%s257] sm:$0xff] %v288
        %291 = vst [vmem:[%s257 + $0x8] sm:$0xff] %v289
        %s292 = sand.u32 %s123, 1
        %s293 = scalar_lea.sflag [#allocation4], %s292
        %s294 = sand.u32 %s123, 1
        %s295 = smul.addr %s294, 16
        %s296 = scalar_lea.vmem [#allocation8], %s295
        // Predicated region
        $region45: #{tpu_custom_call.1} parent=31 // pred_check
          %p297 = pneg %p133
        $region46: #{tpu_custom_call.1} parent=31 // pred_check_branch
          %299 = sbr.rel (%p297) target = $region48
        $region47: #{tpu_custom_call.1} parent=31 // pred_region
          %s300 = smul.u32 2, %s26
          %302 = vsyncadd %s293, 0
          %s303 = smul.addr %s25, 2
          %s304 = sadd.s32 %s300, %s303
          %s305 = smul.addr %s304, 8
          %s306 = scalar_lea.hbm %s3, %s305
          %s307 = sshll.u32 %s296, 4
          %s308 = int_to_ptr.vmem [resolvable:$true] %s307
          %s309 = sshll.u32 %s306, 4
          %s310 = int_to_ptr.hbm [resolvable:$true] %s309
          %315 = dma.vmem_to_hbm [thread:$0]  %s308, 256, %s310, %s293, 128, 128, 8
        $region48: #{tpu_custom_call.1} parent=31 // pred_fallthru
          _
      $region32: #{tpu_custom_call.1} parent=5 // pred_fallthru
        _
      %p316 = scmp.le.s32.totalorder 2, %s16
      // Predicated region
      $region49: #{tpu_custom_call.1} parent=5 // pred_check
        %p317 = pneg %p316
      $region50: #{tpu_custom_call.1} parent=5 // pred_check_branch
        %319 = sbr.rel (%p317) target = $region52
      $region51: #{tpu_custom_call.1} parent=5 // pred_region
        %s320 = ssub.s32 %s16, 2
        // Predicated region
        $region53: #{tpu_custom_call.1} parent=51 // pred_check
          %p321 = pneg %p139
        $region54: #{tpu_custom_call.1} parent=51 // pred_check_branch
          %323 = sbr.rel (%p321) target = $region56
        $region55: #{tpu_custom_call.1} parent=51 // pred_region
          %s324 = sand.u32 %s124, 1
          %s325 = scalar_lea.sflag [#allocation4], %s324
          %s326 = sand.u32 %s124, 1
          %s327 = smul.addr %s326, 16
          %s328 = scalar_lea.vmem [#allocation8], %s327
          %330 = dma.done %s325, 256
        $region56: #{tpu_custom_call.1} parent=51 // pred_fallthru
          _
      $region52: #{tpu_custom_call.1} parent=5 // pred_fallthru
        _
    $region6: #{tpu_custom_call.1} parent=1 // loop_footer
      %s20 = sadd.s32 1, %s16
    $region7: #{tpu_custom_call.1} parent=1 // loop_footer_branch
      %15 = sbr.rel target = $region3
    $region8: #{tpu_custom_call.1} parent=1 // loop_exit
      _
    %331 = vsyncpa [#allocation3], 1
    %s332 = scalar_lea.sflag [#allocation3], 1
    %333 = vsyncpa %s332, 1
    %334 = vsyncpa [#allocation6], 1
    %335 = vsyncpa [#allocation4], 1
    %s336 = scalar_lea.sflag [#allocation4], 1
    %337 = vsyncpa %s336, 1

</llo_original>
